<compile_context>
chip_gen: v5e
topology: v5e:2x2
jax: 0.10.0
libtpu: 0.0.40
codegen_flags: <defaults>
</compile_context>

<pallas_src>
import math

import jax
import jax.numpy as jnp
from jax.experimental import pallas as pl
from jax.experimental.pallas import tpu as pltpu


LANE = 128       # classifier output padded to a lane-dense width
SUBLANE = 8      # output rows padded to a sublane-dense height
LN_EPS = 1e-12   # HF BERT-style LayerNorm eps; set to the real backbone config


# ----------------------------- kernel ---------------------------------------


def _layernorm(x, g, b, eps=LN_EPS):
    mu = jnp.mean(x, axis=-1, keepdims=True)
    var = jnp.mean((x - mu) ** 2, axis=-1, keepdims=True)
    return (x - mu) * jax.lax.rsqrt(var + eps) * g + b


def fused_backbone_cls_kernel(xf_ref, xl_ref,
                              wq_ref, bq_ref,
                              wk_ref, bk_ref,
                              wv_ref, bv_ref,
                              wo_ref, bo_ref,
                              ln1_g_ref, ln1_b_ref,
                              w1_ref, b1_ref,
                              w2_ref, b2_ref,
                              ln2_g_ref, ln2_b_ref,
                              wcls_ref, bcls_ref,
                              o_ref):
    BS, H = xf_ref.shape
    B = xl_ref.shape[0]
    S = BS // B
    BP, LP = o_ref.shape

    xf = xf_ref[...]                      # (B*S, H) bf16 — all tokens (K/V path)
    xl = xl_ref[...]                      # (B, H)   f32  — last token per batch

    # --- K / V projections for ALL tokens (the only full-sequence matmuls) ---
    k = jnp.dot(xf, wk_ref[...], preferred_element_type=jnp.float32) + bk_ref[...]
    v = jnp.dot(xf, wv_ref[...], preferred_element_type=jnp.float32) + bv_ref[...]

    # --- Q projection for the B last-token rows only (1/sqrt(H) pre-folded) ---
    q = jnp.dot(xl.astype(jnp.bfloat16), wq_ref[...],
                preferred_element_type=jnp.float32) + bq_ref[...]          # (B, H)

    # --- last-token attention over the full sequence, single head ---
    # TODO(synk): single-head with head_dim == H; a real HF encoder layer is
    # multi-head, which changes the score/ctx shapes.
    k3 = k.astype(jnp.bfloat16).reshape(B, S, H)
    v3 = v.astype(jnp.bfloat16).reshape(B, S, H)
    q3 = q.astype(jnp.bfloat16).reshape(B, 1, H)
    scores = jnp.einsum("bqh,bkh->bqk", q3, k3,
                        preferred_element_type=jnp.float32)                # (B,1,S)
    m = jnp.max(scores, axis=-1, keepdims=True)
    e = jnp.exp(scores - m)
    denom = jnp.sum(e, axis=-1, keepdims=True)
    p = (e * pl.reciprocal(denom, approx=True)).astype(jnp.bfloat16)       # EUP divide
    ctx = jnp.einsum("bqk,bkh->bqh", p, v3,
                     preferred_element_type=jnp.float32).reshape(B, H)

    attn_out = jnp.dot(ctx.astype(jnp.bfloat16), wo_ref[...],
                       preferred_element_type=jnp.float32) + bo_ref[...]   # (B, H)

    h = _layernorm(xl + attn_out, ln1_g_ref[...], ln1_b_ref[...])

    # --- FFN on the B last-token rows only ---
    f = jnp.dot(h.astype(jnp.bfloat16), w1_ref[...],
                preferred_element_type=jnp.float32) + b1_ref[...]
    # TODO(synk): PyTorch nn.GELU() default is the exact erf form; the tanh
    # approximation is used here (matches HF gelu_new-style backbones).
    f = jax.nn.gelu(f, approximate=True)
    f = jnp.dot(f.astype(jnp.bfloat16), w2_ref[...],
                preferred_element_type=jnp.float32) + b2_ref[...]

    h2 = _layernorm(h + f, ln2_g_ref[...], ln2_b_ref[...])

    # --- classifier: lane-dense (LP=128) and sublane-dense (BP>=8) store ---
    logits = jnp.dot(h2.astype(jnp.bfloat16), wcls_ref[...],
                     preferred_element_type=jnp.float32) + bcls_ref[...]   # (B, LP)
    if BP > B:
        logits = jnp.concatenate(
            [logits, jnp.zeros((BP - B, LP), jnp.float32)], axis=0)
    o_ref[...] = logits.astype(o_ref.dtype)


# ----------------------------- wrappers --------------------------------------


WEIGHT_KEYS = ("wq", "bq", "wk", "bk", "wv", "bv", "wo", "bo",
               "ln1_g", "ln1_b", "w1", "b1", "w2", "b2",
               "ln2_g", "ln2_b", "w_cls", "b_cls")


def _vmem_limit_bytes():
    # Per-generation VMEM budget: ~half the physical capacity (64 MiB on v7x,
    # 128 MiB on v5e/v6e), capped so a plan tuned on v6e cannot OOM a v7x.
    try:
        cap = pltpu.get_tpu_info().vmem_capacity_bytes
    except Exception:
        cap = 128 * 1024 * 1024
    return int(min(cap // 2, 64 * 1024 * 1024))


def fused_forward(x_flat, x_last, weights):
    """x_flat: (B*S, H) bf16; x_last: (B, H) f32; weights ordered as WEIGHT_KEYS.
    Returns (BP, LANE) f32 padded logits; slice [:B, :num_labels] outside."""
    BS, H = x_flat.shape
    B = x_last.shape[0]
    S = BS // B
    F = weights[WEIGHT_KEYS.index("w1")].shape[1]
    LP = weights[WEIGHT_KEYS.index("b_cls")].shape[1]
    BP = ((B + SUBLANE - 1) // SUBLANE) * SUBLANE

    flops = 2 * BS * H * H * 2           # K, V over all B*S tokens
    flops += 2 * B * H * H * 2           # Q, output proj (last tokens only)
    flops += 2 * B * S * H * 2           # scores + ctx
    flops += 2 * B * H * F * 2           # FFN (last tokens only)
    flops += 2 * B * H * LP              # classifier
    bytes_accessed = int(sum(int(a.size) * a.dtype.itemsize
                             for a in (x_flat, x_last, *weights)) + BP * LP * 4)

    # Single grid step: after the last-token reduction the only full-sequence
    # intermediates are K/V at (B*S, H); everything else is B-row slabs, so the
    # whole body fits VMEM with large margin at these shapes.
    # TODO(synk): at realistic H/F/S, tile the B*S rows of the K/V projection
    # on a "parallel" grid axis (megacore on v7x) with an online-softmax carry,
    # and pad H/F to multiples of 128/256 to fill the MXU.
    return pl.pallas_call(
        fused_backbone_cls_kernel,
        out_shape=jax.ShapeDtypeStruct((BP, LP), jnp.float32),
        compiler_params=pltpu.CompilerParams(vmem_limit_bytes=_vmem_limit_bytes()),
        cost_estimate=pl.CostEstimate(
            flops=int(flops),
            transcendentals=int(B * S + B * F),
            bytes_accessed=bytes_accessed),
    )(x_flat, x_last, *weights)


def cls_model_forward(input_ids, params):
    B, S = input_ids.shape
    H = params["tok_emb"].shape[1]
    # Embedding lookup (HF embedding layer) is plain-JAX gather glue. The full
    # (B,S,H) slab is handed to the kernel in bf16 (halves HBM traffic); only
    # the B last-token rows (residual / Q path) stay f32.
    # TODO(synk): at realistic shapes, scalar-prefetch input_ids and gather
    # tok_emb rows inside the kernel to remove this HBM round trip entirely.
    # TODO(synk): no attention/padding mask is applied; last-token pooling uses
    # index S-1 unconditionally (valid only for unpadded inputs).
    emb = params["tok_emb"][input_ids] + params["pos_emb"][:S][None, :, :]   # f32
    x_flat = emb.astype(jnp.bfloat16).reshape(B * S, H)
    x_last = emb[:, -1, :]                                                   # f32
    weights = [params[k] for k in WEIGHT_KEYS]
    logits_padded = fused_forward(x_flat, x_last, weights)
    return logits_padded[:B, :params["num_labels"]]


# ----------------------------- setup / main ----------------------------------


def init_params(key, vocab, S, H, F, num_labels):
    ks = jax.random.split(key, 9)
    n = lambda k, shape: (0.02 * jax.random.normal(k, shape)).astype(jnp.float32)

    w_cls = n(ks[7], (H, num_labels))
    w_cls_pad = jnp.zeros((H, LANE), jnp.float32).at[:, :num_labels].set(w_cls)
    scale = 1.0 / math.sqrt(H)   # attention scale folded into the Q projection

    params = {
        "tok_emb": n(ks[0], (vocab, H)),
        "pos_emb": n(ks[1], (S, H)),
        # Matmul weights stored bf16 (MXU operands, half the DMA / VMEM
        # footprint); biases, LN params and all accumulation stay f32.
        "wq": (n(ks[2], (H, H)) * scale).astype(jnp.bfloat16),  # 1/sqrt(H) folded
        "bq": jnp.zeros((1, H), jnp.float32),                   # (scale bq too if nonzero)
        "wk": n(ks[3], (H, H)).astype(jnp.bfloat16),
        "bk": jnp.zeros((1, H), jnp.float32),
        "wv": n(ks[4], (H, H)).astype(jnp.bfloat16),
        "bv": jnp.zeros((1, H), jnp.float32),
        "wo": n(ks[5], (H, H)).astype(jnp.bfloat16),
        "bo": jnp.zeros((1, H), jnp.float32),
        "ln1_g": jnp.ones((1, H), jnp.float32),
        "ln1_b": jnp.zeros((1, H), jnp.float32),
        "w1": n(ks[6], (H, F)).astype(jnp.bfloat16),
        "b1": jnp.zeros((1, F), jnp.float32),
        "w2": n(ks[8], (F, H)).astype(jnp.bfloat16),
        "b2": jnp.zeros((1, H), jnp.float32),
        "ln2_g": jnp.ones((1, H), jnp.float32),
        "ln2_b": jnp.zeros((1, H), jnp.float32),
        "w_cls": w_cls_pad.astype(jnp.bfloat16),                # lane-padded to 128
        "b_cls": jnp.zeros((1, LANE), jnp.float32),
        "num_labels": num_labels,
    }
    return params


if __name__ == "__main__":
    B, S, H, F, vocab, num_labels = 2, 8, 32, 64, 100, 5

    key = jax.random.PRNGKey(0)
    k_params, k_ids = jax.random.split(key)
    params = init_params(k_params, vocab, S, H, F, num_labels)
    input_ids = jax.random.randint(k_ids, (B, S), 0, vocab, dtype=jnp.int32)

    # TODO(synk): avg_pool (nn.AdaptiveAvgPool1d) and the enc_dec decoder path
    # are unused by the reference forward() with enc_dec=False, so they are
    # not implemented.
    logits = cls_model_forward(input_ids, params)
    logits = jax.block_until_ready(logits)

    assert logits.shape == (B, num_labels)
    assert bool(jnp.all(jnp.isfinite(logits)))
    print("KERNEL_OK")
</pallas_src>

<mosaic_0001>
module attributes {stable_mosaic.version = 11 : i64} {
  func.func @fused_backbone_cls_kernel(%arg0: memref<16x32xbf16, #tpu.memory_space<vmem>>, %arg1: memref<2x32xf32, #tpu.memory_space<vmem>>, %arg2: memref<32x32xbf16, #tpu.memory_space<vmem>>, %arg3: memref<1x32xf32, #tpu.memory_space<vmem>>, %arg4: memref<32x32xbf16, #tpu.memory_space<vmem>>, %arg5: memref<1x32xf32, #tpu.memory_space<vmem>>, %arg6: memref<32x32xbf16, #tpu.memory_space<vmem>>, %arg7: memref<1x32xf32, #tpu.memory_space<vmem>>, %arg8: memref<32x32xbf16, #tpu.memory_space<vmem>>, %arg9: memref<1x32xf32, #tpu.memory_space<vmem>>, %arg10: memref<1x32xf32, #tpu.memory_space<vmem>>, %arg11: memref<1x32xf32, #tpu.memory_space<vmem>>, %arg12: memref<32x64xbf16, #tpu.memory_space<vmem>>, %arg13: memref<1x64xf32, #tpu.memory_space<vmem>>, %arg14: memref<64x32xbf16, #tpu.memory_space<vmem>>, %arg15: memref<1x32xf32, #tpu.memory_space<vmem>>, %arg16: memref<1x32xf32, #tpu.memory_space<vmem>>, %arg17: memref<1x32xf32, #tpu.memory_space<vmem>>, %arg18: memref<32x128xbf16, #tpu.memory_space<vmem>>, %arg19: memref<1x128xf32, #tpu.memory_space<vmem>>, %arg20: memref<8x128xf32, #tpu.memory_space<vmem>>) attributes {dimension_semantics = [], scalar_prefetch = 0 : i64, scratch_operands = 0 : i64, tpu.core_type = #tpu.core_type<tc>} {
    %c0 = arith.constant 0 : index
    %c0_0 = arith.constant 0 : index
    %0 = vector.load %arg0[%c0, %c0_0] : memref<16x32xbf16, #tpu.memory_space<vmem>>, vector<16x32xbf16>
    %c0_1 = arith.constant 0 : index
    %c0_2 = arith.constant 0 : index
    %1 = vector.load %arg1[%c0_1, %c0_2] : memref<2x32xf32, #tpu.memory_space<vmem>>, vector<2x32xf32>
    %c0_3 = arith.constant 0 : index
    %c0_4 = arith.constant 0 : index
    %2 = vector.load %arg4[%c0_3, %c0_4] : memref<32x32xbf16, #tpu.memory_space<vmem>>, vector<32x32xbf16>
    %cst = arith.constant dense<0.000000e+00> : vector<16x32xf32>
    %3 = tpu.matmul %0, %2, %cst {dimension_numbers = #tpu.dot_dimension_numbers<[1], [0], [0], [1], [0, 0, 1, 1], [], []>} : vector<16x32xbf16>, vector<32x32xbf16>, vector<16x32xf32> -> vector<16x32xf32>
    %c0_5 = arith.constant 0 : index
    %c0_6 = arith.constant 0 : index
    %4 = vector.load %arg5[%c0_5, %c0_6] : memref<1x32xf32, #tpu.memory_space<vmem>>, vector<1x32xf32>
    %5 = vector.broadcast %4 : vector<1x32xf32> to vector<16x32xf32>
    %6 = arith.addf %3, %5 : vector<16x32xf32>
    %c0_7 = arith.constant 0 : index
    %c0_8 = arith.constant 0 : index
    %7 = vector.load %arg6[%c0_7, %c0_8] : memref<32x32xbf16, #tpu.memory_space<vmem>>, vector<32x32xbf16>
    %cst_9 = arith.constant dense<0.000000e+00> : vector<16x32xf32>
    %8 = tpu.matmul %0, %7, %cst_9 {dimension_numbers = #tpu.dot_dimension_numbers<[1], [0], [0], [1], [0, 0, 1, 1], [], []>} : vector<16x32xbf16>, vector<32x32xbf16>, vector<16x32xf32> -> vector<16x32xf32>
    %c0_10 = arith.constant 0 : index
    %c0_11 = arith.constant 0 : index
    %9 = vector.load %arg7[%c0_10, %c0_11] : memref<1x32xf32, #tpu.memory_space<vmem>>, vector<1x32xf32>
    %10 = vector.broadcast %9 : vector<1x32xf32> to vector<16x32xf32>
    %11 = arith.addf %8, %10 : vector<16x32xf32>
    %12 = arith.truncf %1 : vector<2x32xf32> to vector<2x32xbf16>
    %c0_12 = arith.constant 0 : index
    %c0_13 = arith.constant 0 : index
    %13 = vector.load %arg2[%c0_12, %c0_13] : memref<32x32xbf16, #tpu.memory_space<vmem>>, vector<32x32xbf16>
    %cst_14 = arith.constant dense<0.000000e+00> : vector<2x32xf32>
    %14 = tpu.matmul %12, %13, %cst_14 {dimension_numbers = #tpu.dot_dimension_numbers<[1], [0], [0], [1], [0, 0, 1, 1], [], []>} : vector<2x32xbf16>, vector<32x32xbf16>, vector<2x32xf32> -> vector<2x32xf32>
    %c0_15 = arith.constant 0 : index
    %c0_16 = arith.constant 0 : index
    %15 = vector.load %arg3[%c0_15, %c0_16] : memref<1x32xf32, #tpu.memory_space<vmem>>, vector<1x32xf32>
    %16 = vector.broadcast %15 : vector<1x32xf32> to vector<2x32xf32>
    %17 = arith.addf %14, %16 : vector<2x32xf32>
    %18 = arith.truncf %6 : vector<16x32xf32> to vector<16x32xbf16>
    %19 = vector.shape_cast %18 : vector<16x32xbf16> to vector<2x8x32xbf16>
    %20 = arith.truncf %11 : vector<16x32xf32> to vector<16x32xbf16>
    %21 = vector.shape_cast %20 : vector<16x32xbf16> to vector<2x8x32xbf16>
    %22 = arith.truncf %17 : vector<2x32xf32> to vector<2x32xbf16>
    %23 = vector.shape_cast %22 : vector<2x32xbf16> to vector<2x1x32xbf16>
    "tpu.trace_start"() <{level = 10 : i32, message = "bqh,bkh->bqk"}> : () -> ()
    %cst_17 = arith.constant dense<0.000000e+00> : vector<2x1x8xf32>
    %24 = tpu.matmul %23, %19, %cst_17 {dimension_numbers = #tpu.dot_dimension_numbers<[2], [2], [1], [1], [0, 0, 0, 1, 1, 1], [0], [0]>} : vector<2x1x32xbf16>, vector<2x8x32xbf16>, vector<2x1x8xf32> -> vector<2x1x8xf32>
    "tpu.trace_stop"() : () -> ()
    %cst_18 = arith.constant dense<0xFF800000> : vector<2x1xf32>
    %25 = vector.multi_reduction <maximumf>, %24, %cst_18 [2] : vector<2x1x8xf32> to vector<2x1xf32>
    %26 = vector.shape_cast %25 : vector<2x1xf32> to vector<2x1x1xf32>
    %27 = vector.broadcast %26 : vector<2x1x1xf32> to vector<2x1x8xf32>
    %28 = arith.subf %24, %27 : vector<2x1x8xf32>
    %29 = math.exp %28 : vector<2x1x8xf32>
    %cst_19 = arith.constant dense<0.000000e+00> : vector<2x1xf32>
    %30 = vector.multi_reduction <add>, %29, %cst_19 [2] : vector<2x1x8xf32> to vector<2x1xf32>
    %31 = vector.shape_cast %30 : vector<2x1xf32> to vector<2x1x1xf32>
    %32 = tpu.reciprocal %31 {approx = true} : vector<2x1x1xf32> -> vector<2x1x1xf32>
    %33 = vector.broadcast %32 : vector<2x1x1xf32> to vector<2x1x8xf32>
    %34 = arith.mulf %29, %33 : vector<2x1x8xf32>
    %35 = arith.truncf %34 : vector<2x1x8xf32> to vector<2x1x8xbf16>
    "tpu.trace_start"() <{level = 10 : i32, message = "bqk,bkh->bqh"}> : () -> ()
    %cst_20 = arith.constant dense<0.000000e+00> : vector<2x1x32xf32>
    %36 = tpu.matmul %35, %21, %cst_20 {dimension_numbers = #tpu.dot_dimension_numbers<[2], [1], [1], [2], [0, 0, 0, 1, 1, 2], [0], [0]>} : vector<2x1x8xbf16>, vector<2x8x32xbf16>, vector<2x1x32xf32> -> vector<2x1x32xf32>
    "tpu.trace_stop"() : () -> ()
    %37 = vector.shape_cast %36 : vector<2x1x32xf32> to vector<2x32xf32>
    %38 = arith.truncf %37 : vector<2x32xf32> to vector<2x32xbf16>
    %c0_21 = arith.constant 0 : index
    %c0_22 = arith.constant 0 : index
    %39 = vector.load %arg8[%c0_21, %c0_22] : memref<32x32xbf16, #tpu.memory_space<vmem>>, vector<32x32xbf16>
    %cst_23 = arith.constant dense<0.000000e+00> : vector<2x32xf32>
    %40 = tpu.matmul %38, %39, %cst_23 {dimension_numbers = #tpu.dot_dimension_numbers<[1], [0], [0], [1], [0, 0, 1, 1], [], []>} : vector<2x32xbf16>, vector<32x32xbf16>, vector<2x32xf32> -> vector<2x32xf32>
    %c0_24 = arith.constant 0 : index
    %c0_25 = arith.constant 0 : index
    %41 = vector.load %arg9[%c0_24, %c0_25] : memref<1x32xf32, #tpu.memory_space<vmem>>, vector<1x32xf32>
    %42 = vector.broadcast %41 : vector<1x32xf32> to vector<2x32xf32>
    %43 = arith.addf %40, %42 : vector<2x32xf32>
    %44 = arith.addf %1, %43 : vector<2x32xf32>
    %c0_26 = arith.constant 0 : index
    %c0_27 = arith.constant 0 : index
    %45 = vector.load %arg10[%c0_26, %c0_27] : memref<1x32xf32, #tpu.memory_space<vmem>>, vector<1x32xf32>
    %c0_28 = arith.constant 0 : index
    %c0_29 = arith.constant 0 : index
    %46 = vector.load %arg11[%c0_28, %c0_29] : memref<1x32xf32, #tpu.memory_space<vmem>>, vector<1x32xf32>
    %cst_30 = arith.constant dense<0.000000e+00> : vector<2xf32>
    %47 = vector.multi_reduction <add>, %44, %cst_30 [1] : vector<2x32xf32> to vector<2xf32>
    %48 = vector.shape_cast %47 : vector<2xf32> to vector<2x1xf32>
    %cst_31 = arith.constant 3.200000e+01 : f32
    %49 = vector.broadcast %cst_31 : f32 to vector<2x1xf32>
    %50 = arith.divf %48, %49 : vector<2x1xf32>
    %51 = vector.broadcast %50 : vector<2x1xf32> to vector<2x32xf32>
    %52 = arith.subf %44, %51 : vector<2x32xf32>
    %53 = arith.mulf %52, %52 : vector<2x32xf32>
    %cst_32 = arith.constant dense<0.000000e+00> : vector<2xf32>
    %54 = vector.multi_reduction <add>, %53, %cst_32 [1] : vector<2x32xf32> to vector<2xf32>
    %55 = vector.shape_cast %54 : vector<2xf32> to vector<2x1xf32>
    %cst_33 = arith.constant 3.200000e+01 : f32
    %56 = vector.broadcast %cst_33 : f32 to vector<2x1xf32>
    %57 = arith.divf %55, %56 : vector<2x1xf32>
    %58 = vector.broadcast %50 : vector<2x1xf32> to vector<2x32xf32>
    %59 = arith.subf %44, %58 : vector<2x32xf32>
    %cst_34 = arith.constant 9.99999996E-13 : f32
    %60 = vector.broadcast %cst_34 : f32 to vector<2x1xf32>
    %61 = arith.addf %57, %60 : vector<2x1xf32>
    %62 = math.rsqrt %61 : vector<2x1xf32>
    %63 = vector.broadcast %62 : vector<2x1xf32> to vector<2x32xf32>
    %64 = arith.mulf %59, %63 : vector<2x32xf32>
    %65 = vector.broadcast %45 : vector<1x32xf32> to vector<2x32xf32>
    %66 = arith.mulf %64, %65 : vector<2x32xf32>
    %67 = vector.broadcast %46 : vector<1x32xf32> to vector<2x32xf32>
    %68 = arith.addf %66, %67 : vector<2x32xf32>
    %69 = arith.truncf %68 : vector<2x32xf32> to vector<2x32xbf16>
    %c0_35 = arith.constant 0 : index
    %c0_36 = arith.constant 0 : index
    %70 = vector.load %arg12[%c0_35, %c0_36] : memref<32x64xbf16, #tpu.memory_space<vmem>>, vector<32x64xbf16>
    %cst_37 = arith.constant dense<0.000000e+00> : vector<2x64xf32>
    %71 = tpu.matmul %69, %70, %cst_37 {dimension_numbers = #tpu.dot_dimension_numbers<[1], [0], [0], [1], [0, 0, 1, 1], [], []>} : vector<2x32xbf16>, vector<32x64xbf16>, vector<2x64xf32> -> vector<2x64xf32>
    %c0_38 = arith.constant 0 : index
    %c0_39 = arith.constant 0 : index
    %72 = vector.load %arg13[%c0_38, %c0_39] : memref<1x64xf32, #tpu.memory_space<vmem>>, vector<1x64xf32>
    %73 = vector.broadcast %72 : vector<1x64xf32> to vector<2x64xf32>
    %74 = arith.addf %71, %73 : vector<2x64xf32>
    %75 = arith.mulf %74, %74 : vector<2x64xf32>
    %76 = arith.mulf %74, %75 : vector<2x64xf32>
    %cst_40 = arith.constant 4.471500e-02 : f32
    %77 = vector.broadcast %cst_40 : f32 to vector<2x64xf32>
    %78 = arith.mulf %77, %76 : vector<2x64xf32>
    %79 = arith.addf %74, %78 : vector<2x64xf32>
    %cst_41 = arith.constant 0.797884583 : f32
    %80 = vector.broadcast %cst_41 : f32 to vector<2x64xf32>
    %81 = arith.mulf %80, %79 : vector<2x64xf32>
    %82 = math.tanh %81 : vector<2x64xf32>
    %cst_42 = arith.constant 1.000000e+00 : f32
    %83 = vector.broadcast %cst_42 : f32 to vector<2x64xf32>
    %84 = arith.addf %83, %82 : vector<2x64xf32>
    %cst_43 = arith.constant 5.000000e-01 : f32
    %85 = vector.broadcast %cst_43 : f32 to vector<2x64xf32>
    %86 = arith.mulf %85, %84 : vector<2x64xf32>
    %87 = arith.mulf %74, %86 : vector<2x64xf32>
    %88 = arith.truncf %87 : vector<2x64xf32> to vector<2x64xbf16>
    %c0_44 = arith.constant 0 : index
    %c0_45 = arith.constant 0 : index
    %89 = vector.load %arg14[%c0_44, %c0_45] : memref<64x32xbf16, #tpu.memory_space<vmem>>, vector<64x32xbf16>
    %cst_46 = arith.constant dense<0.000000e+00> : vector<2x32xf32>
    %90 = tpu.matmul %88, %89, %cst_46 {dimension_numbers = #tpu.dot_dimension_numbers<[1], [0], [0], [1], [0, 0, 1, 1], [], []>} : vector<2x64xbf16>, vector<64x32xbf16>, vector<2x32xf32> -> vector<2x32xf32>
    %c0_47 = arith.constant 0 : index
    %c0_48 = arith.constant 0 : index
    %91 = vector.load %arg15[%c0_47, %c0_48] : memref<1x32xf32, #tpu.memory_space<vmem>>, vector<1x32xf32>
    %92 = vector.broadcast %91 : vector<1x32xf32> to vector<2x32xf32>
    %93 = arith.addf %90, %92 : vector<2x32xf32>
    %94 = arith.addf %68, %93 : vector<2x32xf32>
    %c0_49 = arith.constant 0 : index
    %c0_50 = arith.constant 0 : index
    %95 = vector.load %arg16[%c0_49, %c0_50] : memref<1x32xf32, #tpu.memory_space<vmem>>, vector<1x32xf32>
    %c0_51 = arith.constant 0 : index
    %c0_52 = arith.constant 0 : index
    %96 = vector.load %arg17[%c0_51, %c0_52] : memref<1x32xf32, #tpu.memory_space<vmem>>, vector<1x32xf32>
    %cst_53 = arith.constant dense<0.000000e+00> : vector<2xf32>
    %97 = vector.multi_reduction <add>, %94, %cst_53 [1] : vector<2x32xf32> to vector<2xf32>
    %98 = vector.shape_cast %97 : vector<2xf32> to vector<2x1xf32>
    %cst_54 = arith.constant 3.200000e+01 : f32
    %99 = vector.broadcast %cst_54 : f32 to vector<2x1xf32>
    %100 = arith.divf %98, %99 : vector<2x1xf32>
    %101 = vector.broadcast %100 : vector<2x1xf32> to vector<2x32xf32>
    %102 = arith.subf %94, %101 : vector<2x32xf32>
    %103 = arith.mulf %102, %102 : vector<2x32xf32>
    %cst_55 = arith.constant dense<0.000000e+00> : vector<2xf32>
    %104 = vector.multi_reduction <add>, %103, %cst_55 [1] : vector<2x32xf32> to vector<2xf32>
    %105 = vector.shape_cast %104 : vector<2xf32> to vector<2x1xf32>
    %cst_56 = arith.constant 3.200000e+01 : f32
    %106 = vector.broadcast %cst_56 : f32 to vector<2x1xf32>
    %107 = arith.divf %105, %106 : vector<2x1xf32>
    %108 = vector.broadcast %100 : vector<2x1xf32> to vector<2x32xf32>
    %109 = arith.subf %94, %108 : vector<2x32xf32>
    %cst_57 = arith.constant 9.99999996E-13 : f32
    %110 = vector.broadcast %cst_57 : f32 to vector<2x1xf32>
    %111 = arith.addf %107, %110 : vector<2x1xf32>
    %112 = math.rsqrt %111 : vector<2x1xf32>
    %113 = vector.broadcast %112 : vector<2x1xf32> to vector<2x32xf32>
    %114 = arith.mulf %109, %113 : vector<2x32xf32>
    %115 = vector.broadcast %95 : vector<1x32xf32> to vector<2x32xf32>
    %116 = arith.mulf %114, %115 : vector<2x32xf32>
    %117 = vector.broadcast %96 : vector<1x32xf32> to vector<2x32xf32>
    %118 = arith.addf %116, %117 : vector<2x32xf32>
    %119 = arith.truncf %118 : vector<2x32xf32> to vector<2x32xbf16>
    %c0_58 = arith.constant 0 : index
    %c0_59 = arith.constant 0 : index
    %120 = vector.load %arg18[%c0_58, %c0_59] : memref<32x128xbf16, #tpu.memory_space<vmem>>, vector<32x128xbf16>
    %cst_60 = arith.constant dense<0.000000e+00> : vector<2x128xf32>
    %121 = tpu.matmul %119, %120, %cst_60 {dimension_numbers = #tpu.dot_dimension_numbers<[1], [0], [0], [1], [0, 0, 1, 1], [], []>} : vector<2x32xbf16>, vector<32x128xbf16>, vector<2x128xf32> -> vector<2x128xf32>
    %c0_61 = arith.constant 0 : index
    %c0_62 = arith.constant 0 : index
    %122 = vector.load %arg19[%c0_61, %c0_62] : memref<1x128xf32, #tpu.memory_space<vmem>>, vector<1x128xf32>
    %123 = vector.broadcast %122 : vector<1x128xf32> to vector<2x128xf32>
    %124 = arith.addf %121, %123 : vector<2x128xf32>
    %cst_63 = arith.constant 0.000000e+00 : f32
    %125 = vector.broadcast %cst_63 : f32 to vector<6x128xf32>
    %126 = tpu.concatenate %124, %125 in 0 : vector<2x128xf32>, vector<6x128xf32> -> vector<8x128xf32>
    %c0_64 = arith.constant 0 : index
    %c0_65 = arith.constant 0 : index
    %127 = vector.load %arg20[%c0_64, %c0_65] : memref<8x128xf32, #tpu.memory_space<vmem>>, vector<8x128xf32>
    tpu.vector_store %arg20[%c0_64, %c0_65], %126 {strides = array<i32>} : memref<8x128xf32, #tpu.memory_space<vmem>>, vector<8x128xf32>,
    return
  }
}

</mosaic_0001>

<llo_original>
// kernel: tpu_custom_call.1
$region0: #{tpu_custom_call.1}
  #allocation0 [shape = 'u32[]', space=smem, size = 0x4, offset = 0x4, fixed_abs, tag = 'smem constant byte address 0x4 - core index']
  #allocation1 [shape = 'u32[72,128]{1,0:T(1,128)}', space=vmem, size = 0x9000, scoped, tag = 'internal scratch']
  %s0 = inlined_call_operand.hbm [shape: bf16[16,32], index: 0, kind: input, shape index: {}]
  %s1 = inlined_call_operand.hbm [shape: f32[2,32], index: 1, kind: input, shape index: {}]
  %s2 = inlined_call_operand.vmem [shape: bf16[32,32], index: 2, kind: input, shape index: {}]
  %s3 = inlined_call_operand.hbm [shape: f32[1,32], index: 3, kind: input, shape index: {}]
  %s4 = inlined_call_operand.vmem [shape: bf16[32,32], index: 4, kind: input, shape index: {}]
  %s5 = inlined_call_operand.hbm [shape: f32[1,32], index: 5, kind: input, shape index: {}]
  %s6 = inlined_call_operand.vmem [shape: bf16[32,32], index: 6, kind: input, shape index: {}]
  %s7 = inlined_call_operand.hbm [shape: f32[1,32], index: 7, kind: input, shape index: {}]
  %s8 = inlined_call_operand.hbm [shape: bf16[32,32], index: 8, kind: input, shape index: {}]
  %s9 = inlined_call_operand.hbm [shape: f32[1,32], index: 9, kind: input, shape index: {}]
  %s10 = inlined_call_operand.hbm [shape: f32[1,32], index: 10, kind: input, shape index: {}]
  %s11 = inlined_call_operand.hbm [shape: f32[1,32], index: 11, kind: input, shape index: {}]
  %s12 = inlined_call_operand.hbm [shape: bf16[32,64], index: 12, kind: input, shape index: {}]
  %s13 = inlined_call_operand.hbm [shape: f32[1,64], index: 13, kind: input, shape index: {}]
  %s14 = inlined_call_operand.vmem [shape: bf16[64,32], index: 14, kind: input, shape index: {}]
  %s15 = inlined_call_operand.hbm [shape: f32[1,32], index: 15, kind: input, shape index: {}]
  %s16 = inlined_call_operand.hbm [shape: f32[1,32], index: 16, kind: input, shape index: {}]
  %s17 = inlined_call_operand.hbm [shape: f32[1,32], index: 17, kind: input, shape index: {}]
  %s18 = inlined_call_operand.vmem [shape: bf16[32,128], index: 18, kind: input, shape index: {}]
  %s19 = inlined_call_operand.vmem [shape: f32[1,128], index: 19, kind: input, shape index: {}]
  %s20 = inlined_call_operand.hbm [shape: f32[8,128], index: 20, kind: output, shape index: {}]
  %s21 = sld [smem:[#allocation0]]
  $region146: #{tpu_custom_call.1} parent=0
    _
  %s23 = ssub.s32 1, %s21
  %s24 = scalar_select 0, %s23, %s21
  $region1: #{tpu_custom_call.1} parent=0
    #allocation2 [shape = 'u8[4096]{0}', space=vmem, size = 0x1000, scoped, tag = 'input window, operand 0, single buffered']
    #allocation3 [shape = 's32[1]{0}', space=sflag, size = 0x4, scoped, tag = 'scoped memory for tpu_custom_call.1']
    #allocation4 [shape = 's32[1]{0}', space=sflag, size = 0x4, scoped, tag = 'scoped memory for tpu_custom_call.1']
    #allocation5 [shape = 'u8[1024]{0}', space=vmem, size = 0x400, scoped, tag = 'input window, operand 1, single buffered']
    #allocation6 [shape = 's32[1]{0}', space=sflag, size = 0x4, scoped, tag = 'scoped memory for tpu_custom_call.1']
    #allocation7 [shape = 'u8[512]{0}', space=vmem, size = 0x400, scoped, tag = 'input window, operand 3, single buffered']
    #allocation8 [shape = 'u8[512]{0}', space=vmem, size = 0x400, scoped, tag = 'input window, operand 5, single buffered']
    #allocation9 [shape = 's32[1]{0}', space=sflag, size = 0x4, scoped, tag = 'scoped memory for tpu_custom_call.1']
    #allocation10 [shape = 'u8[512]{0}', space=vmem, size = 0x400, scoped, tag = 'input window, operand 7, single buffered']
    #allocation11 [shape = 'u8[8192]{0}', space=vmem, size = 0x2000, scoped, tag = 'input window, operand 8, single buffered']
    #allocation12 [shape = 's32[1]{0}', space=sflag, size = 0x4, scoped, tag = 'scoped memory for tpu_custom_call.1']
    #allocation13 [shape = 'u8[512]{0}', space=vmem, size = 0x400, scoped, tag = 'input window, operand 9, single buffered']
    #allocation14 [shape = 'u8[512]{0}', space=vmem, size = 0x400, scoped, tag = 'input window, operand 10, single buffered']
    #allocation15 [shape = 's32[1]{0}', space=sflag, size = 0x4, scoped, tag = 'scoped memory for tpu_custom_call.1']
    #allocation16 [shape = 'u8[512]{0}', space=vmem, size = 0x400, scoped, tag = 'input window, operand 11, single buffered']
    #allocation17 [shape = 'u8[8192]{0}', space=vmem, size = 0x2000, scoped, tag = 'input window, operand 12, single buffered']
    #allocation18 [shape = 's32[1]{0}', space=sflag, size = 0x4, scoped, tag = 'scoped memory for tpu_custom_call.1']
    #allocation19 [shape = 'u8[512]{0}', space=vmem, size = 0x400, scoped, tag = 'input window, operand 13, single buffered']
    #allocation20 [shape = 'u8[512]{0}', space=vmem, size = 0x400, scoped, tag = 'input window, operand 15, single buffered']
    #allocation21 [shape = 's32[1]{0}', space=sflag, size = 0x4, scoped, tag = 'scoped memory for tpu_custom_call.1']
    #allocation22 [shape = 'u8[512]{0}', space=vmem, size = 0x400, scoped, tag = 'input window, operand 16, single buffered']
    #allocation23 [shape = 'u8[512]{0}', space=vmem, size = 0x400, scoped, tag = 'input window, operand 17, single buffered']
    #allocation24 [shape = 's32[1]{0}', space=sflag, size = 0x4, scoped, tag = 'scoped memory for tpu_custom_call.1']
    #allocation25 [shape = 'u8[4096]{0}', space=vmem, size = 0x1000, scoped, tag = 'output window, operand 0, single buffered']
    %25 = vsyncpa [#allocation3], 0
    %26 = vsyncpa [#allocation6], 0
    %27 = vsyncpa [#allocation9], 0
    %28 = vsyncpa [#allocation12], 0
    %29 = vsyncpa [#allocation15], 0
    %30 = vsyncpa [#allocation18], 0
    %31 = vsyncpa [#allocation21], 0
    %32 = vsyncpa [#allocation24], 0
    %33 = vsyncpa [#allocation4], 0
    // Predicated region
    $region2: #{tpu_custom_call.1} parent=1 // pred_check
      _
    $region3: #{tpu_custom_call.1} parent=1 // pred_check_branch
      %35 = sbr.rel (0) target = $region5
    $region4: #{tpu_custom_call.1} parent=1 // pred_region
      %37 = vsyncadd [#allocation3], 0
      %s38 = sshll.u32 %s0, 4
      %s39 = int_to_ptr.hbm [resolvable:$true] %s38
      %s40 = sshll.u32 [#allocation2], 4
      %s41 = int_to_ptr.vmem [resolvable:$true] %s40
      %46 = dma.hbm_to_vmem [thread:$0]  %s39, 128, %s41, [#allocation3], 64, 64, 4
    $region5: #{tpu_custom_call.1} parent=1 // pred_fallthru
      _
    // Predicated region
    $region6: #{tpu_custom_call.1} parent=1 // pred_check
      _
    $region7: #{tpu_custom_call.1} parent=1 // pred_check_branch
      %48 = sbr.rel (0) target = $region9
    $region8: #{tpu_custom_call.1} parent=1 // pred_region
      %50 = vsyncadd [#allocation6], 0
      %s52 = sshll.u32 %s1, 4
      %s53 = int_to_ptr.hbm [resolvable:$true] %s52
      %s54 = sshll.u32 [#allocation5], 4
      %s55 = int_to_ptr.vmem [resolvable:$true] %s54
      %57 = dma.hbm_to_vmem [thread:$0]  %s53, 32, %s55, [#allocation6]
    $region9: #{tpu_custom_call.1} parent=1 // pred_fallthru
      _
    // Predicated region
    $region10: #{tpu_custom_call.1} parent=1 // pred_check
      _
    $region11: #{tpu_custom_call.1} parent=1 // pred_check_branch
      %59 = sbr.rel (0) target = $region13
    $region12: #{tpu_custom_call.1} parent=1 // pred_region
      _
    $region13: #{tpu_custom_call.1} parent=1 // pred_fallthru
      _
    // Predicated region
    $region14: #{tpu_custom_call.1} parent=1 // pred_check
      _
    $region15: #{tpu_custom_call.1} parent=1 // pred_check_branch
      %61 = sbr.rel (0) target = $region17
    $region16: #{tpu_custom_call.1} parent=1 // pred_region
      %63 = vsyncadd [#allocation6], 0
      %s65 = sshll.u32 %s3, 4
      %s66 = int_to_ptr.hbm [resolvable:$true] %s65
      %s67 = sshll.u32 [#allocation7], 4
      %s68 = int_to_ptr.vmem [resolvable:$true] %s67
      %70 = dma.hbm_to_vmem [thread:$0]  %s66, 16, %s68, [#allocation6]
    $region17: #{tpu_custom_call.1} parent=1 // pred_fallthru
      _
    // Predicated region
    $region18: #{tpu_custom_call.1} parent=1 // pred_check
      _
    $region19: #{tpu_custom_call.1} parent=1 // pred_check_branch
      %72 = sbr.rel (0) target = $region21
    $region20: #{tpu_custom_call.1} parent=1 // pred_region
      _
    $region21: #{tpu_custom_call.1} parent=1 // pred_fallthru
      _
    // Predicated region
    $region22: #{tpu_custom_call.1} parent=1 // pred_check
      _
    $region23: #{tpu_custom_call.1} parent=1 // pred_check_branch
      %74 = sbr.rel (0) target = $region25
    $region24: #{tpu_custom_call.1} parent=1 // pred_region
      %76 = vsyncadd [#allocation9], 0
      %s78 = sshll.u32 %s5, 4
      %s79 = int_to_ptr.hbm [resolvable:$true] %s78
      %s80 = sshll.u32 [#allocation8], 4
      %s81 = int_to_ptr.vmem [resolvable:$true] %s80
      %83 = dma.hbm_to_vmem [thread:$0]  %s79, 16, %s81, [#allocation9]
    $region25: #{tpu_custom_call.1} parent=1 // pred_fallthru
      _
    // Predicated region
    $region26: #{tpu_custom_call.1} parent=1 // pred_check
      _
    $region27: #{tpu_custom_call.1} parent=1 // pred_check_branch
      %85 = sbr.rel (0) target = $region29
    $region28: #{tpu_custom_call.1} parent=1 // pred_region
      _
    $region29: #{tpu_custom_call.1} parent=1 // pred_fallthru
      _
    // Predicated region
    $region30: #{tpu_custom_call.1} parent=1 // pred_check
      _
    $region31: #{tpu_custom_call.1} parent=1 // pred_check_branch
      %87 = sbr.rel (0) target = $region33
    $region32: #{tpu_custom_call.1} parent=1 // pred_region
      %89 = vsyncadd [#allocation9], 0
      %s91 = sshll.u32 %s7, 4
      %s92 = int_to_ptr.hbm [resolvable:$true] %s91
      %s93 = sshll.u32 [#allocation10], 4
      %s94 = int_to_ptr.vmem [resolvable:$true] %s93
      %96 = dma.hbm_to_vmem [thread:$0]  %s92, 16, %s94, [#allocation9]
    $region33: #{tpu_custom_call.1} parent=1 // pred_fallthru
      _
    // Predicated region
    $region34: #{tpu_custom_call.1} parent=1 // pred_check
      _
    $region35: #{tpu_custom_call.1} parent=1 // pred_check_branch
      %98 = sbr.rel (0) target = $region37
    $region36: #{tpu_custom_call.1} parent=1 // pred_region
      %100 = vsyncadd [#allocation12], 0
      %s101 = sshll.u32 %s8, 4
      %s102 = int_to_ptr.hbm [resolvable:$true] %s101
      %s103 = sshll.u32 [#allocation11], 4
      %s104 = int_to_ptr.vmem [resolvable:$true] %s103
      %109 = dma.hbm_to_vmem [thread:$0]  %s102, 256, %s104, [#allocation12], 64, 64, 4
    $region37: #{tpu_custom_call.1} parent=1 // pred_fallthru
      _
    // Predicated region
    $region38: #{tpu_custom_call.1} parent=1 // pred_check
      _
    $region39: #{tpu_custom_call.1} parent=1 // pred_check_branch
      %111 = sbr.rel (0) target = $region41
    $region40: #{tpu_custom_call.1} parent=1 // pred_region
      %113 = vsyncadd [#allocation12], 0
      %s115 = sshll.u32 %s9, 4
      %s116 = int_to_ptr.hbm [resolvable:$true] %s115
      %s117 = sshll.u32 [#allocation13], 4
      %s118 = int_to_ptr.vmem [resolvable:$true] %s117
      %120 = dma.hbm_to_vmem [thread:$0]  %s116, 16, %s118, [#allocation12]
    $region41: #{tpu_custom_call.1} parent=1 // pred_fallthru
      _
    // Predicated region
    $region42: #{tpu_custom_call.1} parent=1 // pred_check
      _
    $region43: #{tpu_custom_call.1} parent=1 // pred_check_branch
      %122 = sbr.rel (0) target = $region45
    $region44: #{tpu_custom_call.1} parent=1 // pred_region
      %124 = vsyncadd [#allocation15], 0
      %s126 = sshll.u32 %s10, 4
      %s127 = int_to_ptr.hbm [resolvable:$true] %s126
      %s128 = sshll.u32 [#allocation14], 4
      %s129 = int_to_ptr.vmem [resolvable:$true] %s128
      %131 = dma.hbm_to_vmem [thread:$0]  %s127, 16, %s129, [#allocation15]
    $region45: #{tpu_custom_call.1} parent=1 // pred_fallthru
      _
    // Predicated region
    $region46: #{tpu_custom_call.1} parent=1 // pred_check
      _
    $region47: #{tpu_custom_call.1} parent=1 // pred_check_branch
      %133 = sbr.rel (0) target = $region49
    $region48: #{tpu_custom_call.1} parent=1 // pred_region
      %135 = vsyncadd [#allocation15], 0
      %s137 = sshll.u32 %s11, 4
      %s138 = int_to_ptr.hbm [resolvable:$true] %s137
      %s139 = sshll.u32 [#allocation16], 4
      %s140 = int_to_ptr.vmem [resolvable:$true] %s139
      %142 = dma.hbm_to_vmem [thread:$0]  %s138, 16, %s140, [#allocation15]
    $region49: #{tpu_custom_call.1} parent=1 // pred_fallthru
      _
    // Predicated region
    $region50: #{tpu_custom_call.1} parent=1 // pred_check
      _
    $region51: #{tpu_custom_call.1} parent=1 // pred_check_branch
      %144 = sbr.rel (0) target = $region53
    $region52: #{tpu_custom_call.1} parent=1 // pred_region
      %146 = vsyncadd [#allocation18], 0
      %s147 = sshll.u32 %s12, 4
      %s148 = int_to_ptr.hbm [resolvable:$true] %s147
      %s149 = sshll.u32 [#allocation17], 4
      %s150 = int_to_ptr.vmem [resolvable:$true] %s149
      %155 = dma.hbm_to_vmem [thread:$0]  %s148, 256, %s150, [#allocation18], 64, 64, 4
    $region53: #{tpu_custom_call.1} parent=1 // pred_fallthru
      _
    // Predicated region
    $region54: #{tpu_custom_call.1} parent=1 // pred_check
      _
    $region55: #{tpu_custom_call.1} parent=1 // pred_check_branch
      %157 = sbr.rel (0) target = $region57
    $region56: #{tpu_custom_call.1} parent=1 // pred_region
      %159 = vsyncadd [#allocation18], 0
      %s161 = sshll.u32 %s13, 4
      %s162 = int_to_ptr.hbm [resolvable:$true] %s161
      %s163 = sshll.u32 [#allocation19], 4
      %s164 = int_to_ptr.vmem [resolvable:$true] %s163
      %166 = dma.hbm_to_vmem [thread:$0]  %s162, 16, %s164, [#allocation18]
    $region57: #{tpu_custom_call.1} parent=1 // pred_fallthru
      _
    // Predicated region
    $region58: #{tpu_custom_call.1} parent=1 // pred_check
      _
    $region59: #{tpu_custom_call.1} parent=1 // pred_check_branch
      %168 = sbr.rel (0) target = $region61
    $region60: #{tpu_custom_call.1} parent=1 // pred_region
      _
    $region61: #{tpu_custom_call.1} parent=1 // pred_fallthru
      _
    // Predicated region
    $region62: #{tpu_custom_call.1} parent=1 // pred_check
      _
    $region63: #{tpu_custom_call.1} parent=1 // pred_check_branch
      %170 = sbr.rel (0) target = $region65
    $region64: #{tpu_custom_call.1} parent=1 // pred_region
      %172 = vsyncadd [#allocation21], 0
      %s174 = sshll.u32 %s15, 4
      %s175 = int_to_ptr.hbm [resolvable:$true] %s174
      %s176 = sshll.u32 [#allocation20], 4
      %s177 = int_to_ptr.vmem [resolvable:$true] %s176
      %179 = dma.hbm_to_vmem [thread:$0]  %s175, 16, %s177, [#allocation21]
    $region65: #{tpu_custom_call.1} parent=1 // pred_fallthru
      _
    // Predicated region
    $region66: #{tpu_custom_call.1} parent=1 // pred_check
      _
    $region67: #{tpu_custom_call.1} parent=1 // pred_check_branch
      %181 = sbr.rel (0) target = $region69
    $region68: #{tpu_custom_call.1} parent=1 // pred_region
      %183 = vsyncadd [#allocation21], 0
      %s185 = sshll.u32 %s16, 4
      %s186 = int_to_ptr.hbm [resolvable:$true] %s185
      %s187 = sshll.u32 [#allocation22], 4
      %s188 = int_to_ptr.vmem [resolvable:$true] %s187
      %190 = dma.hbm_to_vmem [thread:$0]  %s186, 16, %s188, [#allocation21]
    $region69: #{tpu_custom_call.1} parent=1 // pred_fallthru
      _
    // Predicated region
    $region70: #{tpu_custom_call.1} parent=1 // pred_check
      _
    $region71: #{tpu_custom_call.1} parent=1 // pred_check_branch
      %192 = sbr.rel (0) target = $region73
    $region72: #{tpu_custom_call.1} parent=1 // pred_region
      %194 = vsyncadd [#allocation24], 0
      %s196 = sshll.u32 %s17, 4
      %s197 = int_to_ptr.hbm [resolvable:$true] %s196
      %s198 = sshll.u32 [#allocation23], 4
      %s199 = int_to_ptr.vmem [resolvable:$true] %s198
      %201 = dma.hbm_to_vmem [thread:$0]  %s197, 16, %s199, [#allocation24]
    $region73: #{tpu_custom_call.1} parent=1 // pred_fallthru
      _
    // Predicated region
    $region74: #{tpu_custom_call.1} parent=1 // pred_check
      _
    $region75: #{tpu_custom_call.1} parent=1 // pred_check_branch
      %203 = sbr.rel (0) target = $region77
    $region76: #{tpu_custom_call.1} parent=1 // pred_region
      _
    $region77: #{tpu_custom_call.1} parent=1 // pred_fallthru
      _
    // Predicated region
    $region78: #{tpu_custom_call.1} parent=1 // pred_check
      _
    $region79: #{tpu_custom_call.1} parent=1 // pred_check_branch
      %205 = sbr.rel (0) target = $region81
    $region80: #{tpu_custom_call.1} parent=1 // pred_region
      _
    $region81: #{tpu_custom_call.1} parent=1 // pred_fallthru
      _
    // Predicated region
    $region82: #{tpu_custom_call.1} parent=1 // pred_check
      _
    $region83: #{tpu_custom_call.1} parent=1 // pred_check_branch
      %207 = sbr.rel (0) target = $region85
    $region84: #{tpu_custom_call.1} parent=1 // pred_region
      %209 = dma.done [#allocation3], 128
    $region85: #{tpu_custom_call.1} parent=1 // pred_fallthru
      _
    // Predicated region
    $region86: #{tpu_custom_call.1} parent=1 // pred_check
      _
    $region87: #{tpu_custom_call.1} parent=1 // pred_check_branch
      %211 = sbr.rel (0) target = $region89
    $region88: #{tpu_custom_call.1} parent=1 // pred_region
      %213 = dma.done [#allocation6], 32
    $region89: #{tpu_custom_call.1} parent=1 // pred_fallthru
      _
    // Predicated region
    $region90: #{tpu_custom_call.1} parent=1 // pred_check
      _
    $region91: #{tpu_custom_call.1} parent=1 // pred_check_branch
      %215 = sbr.rel (0) target = $region93
    $region92: #{tpu_custom_call.1} parent=1 // pred_region
      %217 = dma.done [#allocation6], 16
    $region93: #{tpu_custom_call.1} parent=1 // pred_fallthru
      _
    // Predicated region
    $region94: #{tpu_custom_call.1} parent=1 // pred_check
      _
    $region95: #{tpu_custom_call.1} parent=1 // pred_check_branch
      %219 = sbr.rel (0) target = $region97
    $region96: #{tpu_custom_call.1} parent=1 // pred_region
      %221 = dma.done [#allocation9], 16
    $region97: #{tpu_custom_call.1} parent=1 // pred_fallthru
      _
    // Predicated region
    $region98: #{tpu_custom_call.1} parent=1 // pred_check
      _
    $region99: #{tpu_custom_call.1} parent=1 // pred_check_branch
      %223 = sbr.rel (0) target = $region101
    $region100: #{tpu_custom_call.1} parent=1 // pred_region
      %225 = dma.done [#allocation9], 16
    $region101: #{tpu_custom_call.1} parent=1 // pred_fallthru
      _
    // Predicated region
    $region102: #{tpu_custom_call.1} parent=1 // pred_check
      _
    $region103: #{tpu_custom_call.1} parent=1 // pred_check_branch
      %227 = sbr.rel (0) target = $region105
    $region104: #{tpu_custom_call.1} parent=1 // pred_region
      %229 = dma.done [#allocation12], 256
    $region105: #{tpu_custom_call.1} parent=1 // pred_fallthru
      _
    // Predicated region
    $region106: #{tpu_custom_call.1} parent=1 // pred_check
      _
    $region107: #{tpu_custom_call.1} parent=1 // pred_check_branch
      %231 = sbr.rel (0) target = $region109
    $region108: #{tpu_custom_call.1} parent=1 // pred_region
      %233 = dma.done [#allocation12], 16
    $region109: #{tpu_custom_call.1} parent=1 // pred_fallthru
      _
    // Predicated region
    $region110: #{tpu_custom_call.1} parent=1 // pred_check
      _
    $region111: #{tpu_custom_call.1} parent=1 // pred_check_branch
      %235 = sbr.rel (0) target = $region113
    $region112: #{tpu_custom_call.1} parent=1 // pred_region
      %237 = dma.done [#allocation15], 16
    $region113: #{tpu_custom_call.1} parent=1 // pred_fallthru
      _
    // Predicated region
    $region114: #{tpu_custom_call.1} parent=1 // pred_check
      _
    $region115: #{tpu_custom_call.1} parent=1 // pred_check_branch
      %239 = sbr.rel (0) target = $region117
    $region116: #{tpu_custom_call.1} parent=1 // pred_region
      %241 = dma.done [#allocation15], 16
    $region117: #{tpu_custom_call.1} parent=1 // pred_fallthru
      _
    // Predicated region
    $region118: #{tpu_custom_call.1} parent=1 // pred_check
      _
    $region119: #{tpu_custom_call.1} parent=1 // pred_check_branch
      %243 = sbr.rel (0) target = $region121
    $region120: #{tpu_custom_call.1} parent=1 // pred_region
      %245 = dma.done [#allocation18], 256
    $region121: #{tpu_custom_call.1} parent=1 // pred_fallthru
      _
    // Predicated region
    $region122: #{tpu_custom_call.1} parent=1 // pred_check
      _
    $region123: #{tpu_custom_call.1} parent=1 // pred_check_branch
      %247 = sbr.rel (0) target = $region125
    $region124: #{tpu_custom_call.1} parent=1 // pred_region
      %249 = dma.done [#allocation18], 16
    $region125: #{tpu_custom_call.1} parent=1 // pred_fallthru
      _
    // Predicated region
    $region126: #{tpu_custom_call.1} parent=1 // pred_check
      _
    $region127: #{tpu_custom_call.1} parent=1 // pred_check_branch
      %251 = sbr.rel (0) target = $region129
    $region128: #{tpu_custom_call.1} parent=1 // pred_region
      %253 = dma.done [#allocation21], 16
    $region129: #{tpu_custom_call.1} parent=1 // pred_fallthru
      _
    // Predicated region
    $region130: #{tpu_custom_call.1} parent=1 // pred_check
      _
    $region131: #{tpu_custom_call.1} parent=1 // pred_check_branch
      %255 = sbr.rel (0) target = $region133
    $region132: #{tpu_custom_call.1} parent=1 // pred_region
      %257 = dma.done [#allocation21], 16
    $region133: #{tpu_custom_call.1} parent=1 // pred_fallthru
      _
    // Predicated region
    $region134: #{tpu_custom_call.1} parent=1 // pred_check
      _
    $region135: #{tpu_custom_call.1} parent=1 // pred_check_branch
      %259 = sbr.rel (0) target = $region137
    $region136: #{tpu_custom_call.1} parent=1 // pred_region
      %261 = dma.done [#allocation24], 16
    $region137: #{tpu_custom_call.1} parent=1 // pred_fallthru
      _
    %v263 = vld [vmem:[#allocation2] sm:$0xf]
    %v264 = vld [vmem:[#allocation2 + $0x4] sm:$0xf]
    %v265 = vld [vmem:[#allocation5] sm:$0x3]
    %v266 = vld [vmem:[%s4] sm:$0xf]
    %v267 = vld [vmem:[%s4 + $0x4] sm:$0xf]
    %v268 = vld [vmem:[%s4 + $0x8] sm:$0xf]
    %v269 = vld [vmem:[%s4 + $0xc] sm:$0xf]
    %v270 = vld [vmem:[#allocation8] sm:$0x1]
    %v272 = vperm.slane %v270, 0
    %v276 = vunpack.c.l.b16 %v263
    %v277 = vunpack.c.l.b16 %v264
    %v278 = vpack.c.b16 %v277, %v276
    %v283 = vunpack.c.l.b16 %v266
    %v284 = vunpack.c.l.b16 %v267
    %v285 = vunpack.c.l.b16 %v268
    %v286 = vunpack.c.l.b16 %v269
    %v287 = vpack.c.b16 %v284, %v283
    %v288 = vpack.c.b16 %v286, %v285
    %vm291 = vcmask 261120
    %v293 = vsel %vm291, %v278, 0
    %295 = vmatpush.bf16.msra.mxu0 0
    %296 = vmatpush.bf16.msra.mxu0 0
    %297 = vmatpush.bf16.msra.mxu0 0
    %298 = vmatpush.bf16.msra.mxu0 0
    %299 = vmatpush.bf16.msra.mxu0 0
    %300 = vmatpush.bf16.msra.mxu0 0
    %301 = vmatpush.bf16.msra.mxu0 %v288
    %302 = vmatpush.bf16.msra.mxu0 %v287
    %303 = vmatmul.bf16.gmra.mxu0 %v293
    %v304 = vpop.f32.mrf.mxu0
    %v305 = vadd.f32 %v272, %v304
    %v306 = vpop.f32.mrf.mxu0
    %v307 = vadd.f32 %v272, %v306
    %308 = vdwg.mxu0
    %v309 = vld [vmem:[%s6] sm:$0xf]
    %v310 = vld [vmem:[%s6 + $0x4] sm:$0xf]
    %v311 = vld [vmem:[%s6 + $0x8] sm:$0xf]
    %v312 = vld [vmem:[%s6 + $0xc] sm:$0xf]
    %v313 = vld [vmem:[#allocation10] sm:$0x1]
    %v315 = vperm.slane %v313, 0
    %v321 = vunpack.c.l.b16 %v309
    %v322 = vunpack.c.l.b16 %v310
    %v323 = vunpack.c.l.b16 %v311
    %v324 = vunpack.c.l.b16 %v312
    %v325 = vpack.c.b16 %v322, %v321
    %v326 = vpack.c.b16 %v324, %v323
    %329 = vmatpush.bf16.msra.mxu0 0
    %330 = vmatpush.bf16.msra.mxu0 0
    %331 = vmatpush.bf16.msra.mxu0 0
    %332 = vmatpush.bf16.msra.mxu0 0
    %333 = vmatpush.bf16.msra.mxu0 0
    %334 = vmatpush.bf16.msra.mxu0 0
    %335 = vmatpush.bf16.msra.mxu0 %v326
    %336 = vmatpush.bf16.msra.mxu0 %v325
    %337 = vmatmul.bf16.gmra.mxu0 %v293
    %v338 = vpop.f32.mrf.mxu0
    %v339 = vadd.f32 %v315, %v338
    %v340 = vpop.f32.mrf.mxu0
    %v341 = vadd.f32 %v315, %v340
    %342 = vdwg.mxu0
    %v343 = vpack.c.bf16 %v265, %v265
    %v344 = vld [vmem:[%s2] sm:$0xf]
    %v345 = vld [vmem:[%s2 + $0x4] sm:$0xf]
    %v346 = vld [vmem:[%s2 + $0x8] sm:$0xf]
    %v347 = vld [vmem:[%s2 + $0xc] sm:$0xf]
    %v348 = vld [vmem:[#allocation7] sm:$0x1]
    %v350 = vperm.slane %v348, 0
    %v356 = vunpack.c.l.b16 %v344
    %v357 = vunpack.c.l.b16 %v345
    %v358 = vunpack.c.l.b16 %v346
    %v359 = vunpack.c.l.b16 %v347
    %v360 = vpack.c.b16 %v357, %v356
    %v361 = vpack.c.b16 %v359, %v358
    %v365 = vsel %vm291, %v343, 0
    %367 = vmatpush.bf16.msra.mxu0 0
    %368 = vmatpush.bf16.msra.mxu0 0
    %369 = vmatpush.bf16.msra.mxu0 0
    %370 = vmatpush.bf16.msra.mxu0 0
    %371 = vmatpush.bf16.msra.mxu0 0
    %372 = vmatpush.bf16.msra.mxu0 0
    %373 = vmatpush.bf16.msra.mxu0 %v361
    %374 = vmatpush.bf16.msra.mxu0 %v360
    %375 = vmatmul.bf16.gmra.mxu0 %v365
    %v376 = vpop.f32.mrf.mxu0
    %v377 = vadd.f32 %v350, %v376
    %v378 = vpop.f32.mrf.mxu0
    %379 = vdwg.mxu0
    %v380 = vpack.c.bf16 %v305, %v305
    %v381 = vpack.c.bf16 %v307, %v307
    %v382 = vpack.c.bf16 %v339, %v339
    %v383 = vpack.c.bf16 %v341, %v341
    %v384 = vpack.c.bf16 %v377, %v377
    %v386 = vrot.slane %v384, 3
    %vm387 = vcmask 1040384
    %v390 = vsel %vm387, %v384, %v386
    %v392 = vunpack.i.l.s16 %v390
    %v393 = vunpack.i.h.s16 %v390
    %v394 = vpack.i.b16 %v392, %v392
    %v395 = vperm.slane %v394, 0
    %v397 = vsel %vm291, %v395, 0
    %v400 = vsel %vm291, %v380, 0
    %402 = vmatpush.bf16.xpose.msra.mxu0 0
    %403 = vmatpush.bf16.xpose.msra.mxu0 0
    %404 = vmatpush.bf16.xpose.msra.mxu0 0
    %405 = vmatpush.bf16.xpose.msra.mxu0 0
    %406 = vmatpush.bf16.xpose.msra.mxu0 0
    %407 = vmatpush.bf16.xpose.msra.mxu0 0
    %408 = vmatpush.bf16.xpose.msra.mxu0 0
    %409 = vmatpush.bf16.xpose.msra.mxu0 %v400
    %410 = vmatmul.bf16.gmra.mxu0 %v397
    %v411 = vpop.f32.mrf.mxu0
    %v412 = vadd.f32 0.0, %v411
    %v413 = vpop.f32.mrf.mxu0
    %414 = vdwg.mxu0
    %v415 = vpack.i.b16 %v393, %v393
    %v416 = vperm.slane %v415, 0
    %v418 = vsel %vm291, %v416, 0
    %v421 = vsel %vm291, %v381, 0
    %423 = vmatpush.bf16.xpose.msra.mxu0 0
    %424 = vmatpush.bf16.xpose.msra.mxu0 0
    %425 = vmatpush.bf16.xpose.msra.mxu0 0
    %426 = vmatpush.bf16.xpose.msra.mxu0 0
    %427 = vmatpush.bf16.xpose.msra.mxu0 0
    %428 = vmatpush.bf16.xpose.msra.mxu0 0
    %429 = vmatpush.bf16.xpose.msra.mxu0 0
    %430 = vmatpush.bf16.xpose.msra.mxu0 %v421
    %431 = vmatmul.bf16.gmra.mxu0 %v418
    %v432 = vpop.f32.mrf.mxu0
    %v433 = vadd.f32 0.0, %v432
    %v434 = vpop.f32.mrf.mxu0
    %435 = vdwg.mxu0
    %vm436 = vcmask 57344
    %v437 = vsel %vm436, %v412, -inf
    %438 = vmax.xlane.f32.xlu0 %v437
    %v439 = vpop.xlane.xlu0 %438
    %v440 = vsel %vm436, %v433, -inf
    %441 = vmax.xlane.f32.xlu0 %v440
    %v442 = vpop.xlane.xlu0 %441
    %v443 = vsub.f32 %v412, %v439
    %v444 = vsub.f32 %v433, %v442
    %v445 = vmul.f32 %v443, 1.442695
    %v446 = vpow.pop %v445
    %v447 = vmul.f32 %v444, 1.442695
    %v448 = vpow.pop %v447
    %v449 = vsel %vm436, %v446, 0.0
    %450 = vadd.xlane.f32.xlu0 %v449
    %v451 = vpop.xlane.xlu0 %450
    %v452 = vsel %vm436, %v448, 0.0
    %453 = vadd.xlane.f32.xlu0 %v452
    %v454 = vpop.xlane.xlu0 %453
    %v455 = vrcp.pop %v451
    %v456 = vrcp.pop %v454
    %v457 = vmul.f32 %v446, %v455
    %v458 = vmul.f32 %v448, %v456
    %v459 = vpack.c.bf16 %v457, %v457
    %v460 = vpack.c.bf16 %v458, %v458
    %vm461 = vcmask 64512
    %v463 = vsel %vm461, %v459, 0
    %vm465 = vcmask 1043456
    %v467 = vsel %vm465, %v382, 0
    %469 = vmatpush.bf16.msra.mxu0 0
    %470 = vmatpush.bf16.msra.mxu0 0
    %471 = vmatpush.bf16.msra.mxu0 0
    %472 = vmatpush.bf16.msra.mxu0 0
    %473 = vmatpush.bf16.msra.mxu0 0
    %474 = vmatpush.bf16.msra.mxu0 0
    %475 = vmatpush.bf16.msra.mxu0 0
    %476 = vmatpush.bf16.msra.mxu0 %v467
    %477 = vmatmul.bf16.gmra.mxu0 %v463
    %v478 = vpop.f32.mrf.mxu0
    %v479 = vadd.f32 0.0, %v478
    %v480 = vpop.f32.mrf.mxu0
    %481 = vdwg.mxu0
    %v483 = vsel %vm461, %v460, 0
    %v486 = vsel %vm465, %v383, 0
    %488 = vmatpush.bf16.msra.mxu0 0
    %489 = vmatpush.bf16.msra.mxu0 0
    %490 = vmatpush.bf16.msra.mxu0 0
    %491 = vmatpush.bf16.msra.mxu0 0
    %492 = vmatpush.bf16.msra.mxu0 0
    %493 = vmatpush.bf16.msra.mxu0 0
    %494 = vmatpush.bf16.msra.mxu0 0
    %495 = vmatpush.bf16.msra.mxu0 %v486
    %496 = vmatmul.bf16.gmra.mxu0 %v483
    %v497 = vpop.f32.mrf.mxu0
    %v498 = vadd.f32 0.0, %v497
    %v499 = vpop.f32.mrf.mxu0
    %500 = vdwg.mxu0
    %v501 = vpack.c.bf16 %v479, %v479
    %v502 = vpack.c.bf16 %v498, %v498
    %v503 = vld [vmem:[#allocation11] sm:$0xf]
    %v504 = vld [vmem:[#allocation11 + $0x4] sm:$0xf]
    %v505 = vld [vmem:[#allocation11 + $0x8] sm:$0xf]
    %v506 = vld [vmem:[#allocation11 + $0xc] sm:$0xf]
    %v507 = vld [vmem:[#allocation13] sm:$0x1]
    %v509 = vperm.slane %v507, 0
    %v513 = vunpack.c.l.b16 %v501
    %v514 = vunpack.c.l.b16 %v502
    %v515 = vrot.slane %v514, 7
    %vm516 = vcmask 1041409
    %v517 = vsel %vm516, %v515, %v513
    %v518 = vpack.c.b16 %v517, %v517
    %v523 = vunpack.c.l.b16 %v503
    %v524 = vunpack.c.l.b16 %v504
    %v525 = vunpack.c.l.b16 %v505
    %v526 = vunpack.c.l.b16 %v506
    %v527 = vpack.c.b16 %v524, %v523
    %v528 = vpack.c.b16 %v526, %v525
    %v532 = vsel %vm291, %v518, 0
    %534 = vmatpush.bf16.msra.mxu0 0
    %535 = vmatpush.bf16.msra.mxu0 0
    %536 = vmatpush.bf16.msra.mxu0 0
    %537 = vmatpush.bf16.msra.mxu0 0
    %538 = vmatpush.bf16.msra.mxu0 0
    %539 = vmatpush.bf16.msra.mxu0 0
    %540 = vmatpush.bf16.msra.mxu0 %v528
    %541 = vmatpush.bf16.msra.mxu0 %v527
    %542 = vmatmul.bf16.gmra.mxu0 %v532
    %v543 = vpop.f32.mrf.mxu0
    %v544 = vadd.f32 %v509, %v543
    %v545 = vpop.f32.mrf.mxu0
    %546 = vdwg.mxu0
    %v547 = vadd.f32 %v265, %v544
    %v548 = vld [vmem:[#allocation14] sm:$0x1]
    %v549 = vld [vmem:[#allocation16] sm:$0x1]
    %vm550 = vcmask 254976
    %v551 = vsel %vm550, %v547, 0.0
    %552 = vadd.xlane.f32.xlu0 %v551
    %v553 = vpop.xlane.xlu0 %552
    %v554 = vrcp.pop 32.0
    %v555 = vmul.f32 32.0, %v554
    %v556 = vsub.f32 1.0, %v555
    %v557 = vmul.f32 %v554, %v556
    %v558 = vadd.f32 %v554, %v557
    %vm559 = vweird.f32 %v554
    %v560 = vsel %vm559, %v554, %v558
    %v561 = vmul.f32 %v553, %v560
    %v562 = vsub.f32 %v547, %v561
    %v563 = vmul.f32 %v562, %v562
    %v564 = vsel %vm550, %v563, 0.0
    %565 = vadd.xlane.f32.xlu0 %v564
    %v566 = vpop.xlane.xlu0 %565
    %v567 = vmul.f32 %v566, %v560
    %v568 = vadd.f32 %v567, 1e-12
    %v569 = vrsqrt.pop %v568
    %v570 = vmul.f32 %v569, %v568
    %v571 = vmul.f32 %v570, %v569
    %v572 = vmul.f32 0.5, %v571
    %v573 = vsub.f32 1.5, %v572
    %v574 = vmul.f32 %v569, %v573
    %vm575 = vweird.f32 %v568
    %vm576 = vweird.f32 %v569
    %vm577 = vmor %vm575, %vm576
    %v578 = vsel %vm577, %v569, %v574
    %v579 = vmul.f32 %v562, %v578
    %v581 = vperm.slane %v548, 0
    %v583 = vmul.f32 %v579, %v581
    %v585 = vperm.slane %v549, 0
    %v587 = vadd.f32 %v583, %v585
    %v588 = vpack.c.bf16 %v587, %v587
    %v589 = vld [vmem:[#allocation17] sm:$0xf]
    %v590 = vld [vmem:[#allocation17 + $0x4] sm:$0xf]
    %v591 = vld [vmem:[#allocation17 + $0x8] sm:$0xf]
    %v592 = vld [vmem:[#allocation17 + $0xc] sm:$0xf]
    %v593 = vld [vmem:[#allocation19] sm:$0x1]
    %v595 = vperm.slane %v593, 0
    %v601 = vunpack.c.l.b16 %v589
    %v602 = vunpack.c.l.b16 %v590
    %v603 = vunpack.c.l.b16 %v591
    %v604 = vunpack.c.l.b16 %v592
    %v605 = vpack.c.b16 %v602, %v601
    %v606 = vpack.c.b16 %v604, %v603
    %v610 = vsel %vm291, %v588, 0
    %612 = vmatpush.bf16.msra.mxu0 0
    %613 = vmatpush.bf16.msra.mxu0 0
    %614 = vmatpush.bf16.msra.mxu0 0
    %615 = vmatpush.bf16.msra.mxu0 0
    %616 = vmatpush.bf16.msra.mxu0 0
    %617 = vmatpush.bf16.msra.mxu0 0
    %618 = vmatpush.bf16.msra.mxu0 %v606
    %619 = vmatpush.bf16.msra.mxu0 %v605
    %620 = vmatmul.bf16.gmra.mxu0 %v610
    %v621 = vpop.f32.mrf.mxu0
    %v622 = vadd.f32 %v595, %v621
    %v623 = vpop.f32.mrf.mxu0
    %624 = vdwg.mxu0
    %v625 = vmul.f32 %v622, %v622
    %v626 = vmul.f32 %v622, %v625
    %v627 = vmul.f32 %v626, 0.044715
    %v628 = vadd.f32 %v622, %v627
    %v629 = vmul.f32 %v628, 0.7978846
    %v630 = vtanh.pop %v629
    %v631 = vadd.f32 %v630, 1.0
    %v632 = vmul.f32 %v631, 0.5
    %v633 = vmul.f32 %v622, %v632
    %v634 = vpack.c.bf16 %v633, %v633
    %v635 = vld [vmem:[%s14] sm:$0xf]
    %v636 = vld [vmem:[%s14 + $0x4] sm:$0xf]
    %v637 = vld [vmem:[%s14 + $0x8] sm:$0xf]
    %v638 = vld [vmem:[%s14 + $0xc] sm:$0xf]
    %v639 = vld [vmem:[%s14 + $0x10] sm:$0xf]
    %v640 = vld [vmem:[%s14 + $0x14] sm:$0xf]
    %v641 = vld [vmem:[%s14 + $0x18] sm:$0xf]
    %v642 = vld [vmem:[%s14 + $0x1c] sm:$0xf]
    %v643 = vld [vmem:[#allocation20] sm:$0x1]
    %v645 = vperm.slane %v643, 0
    %v655 = vunpack.c.l.b16 %v635
    %v656 = vunpack.c.l.b16 %v636
    %v657 = vunpack.c.l.b16 %v637
    %v658 = vunpack.c.l.b16 %v638
    %v659 = vunpack.c.l.b16 %v639
    %v660 = vunpack.c.l.b16 %v640
    %v661 = vunpack.c.l.b16 %v641
    %v662 = vunpack.c.l.b16 %v642
    %v663 = vpack.c.b16 %v656, %v655
    %v664 = vpack.c.b16 %v658, %v657
    %v665 = vpack.c.b16 %v660, %v659
    %v666 = vpack.c.b16 %v662, %v661
    %vm671 = vcmask 523264
    %v673 = vsel %vm671, %v634, 0
    %675 = vmatpush.bf16.msra.mxu0 0
    %676 = vmatpush.bf16.msra.mxu0 0
    %677 = vmatpush.bf16.msra.mxu0 0
    %678 = vmatpush.bf16.msra.mxu0 0
    %679 = vmatpush.bf16.msra.mxu0 %v666
    %680 = vmatpush.bf16.msra.mxu0 %v665
    %681 = vmatpush.bf16.msra.mxu0 %v664
    %682 = vmatpush.bf16.msra.mxu0 %v663
    %683 = vmatmul.bf16.gmra.mxu0 %v673
    %v684 = vpop.f32.mrf.mxu0
    %v685 = vadd.f32 %v645, %v684
    %v686 = vpop.f32.mrf.mxu0
    %687 = vdwg.mxu0
    %v688 = vadd.f32 %v587, %v685
    %v689 = vld [vmem:[#allocation22] sm:$0x1]
    %v690 = vld [vmem:[#allocation23] sm:$0x1]
    %v691 = vsel %vm550, %v688, 0.0
    %692 = vadd.xlane.f32.xlu0 %v691
    %v693 = vpop.xlane.xlu0 %692
    %v694 = vmul.f32 %v693, %v560
    %v695 = vsub.f32 %v688, %v694
    %v696 = vmul.f32 %v695, %v695
    %v697 = vsel %vm550, %v696, 0.0
    %698 = vadd.xlane.f32.xlu0 %v697
    %v699 = vpop.xlane.xlu0 %698
    %v700 = vmul.f32 %v699, %v560
    %v701 = vadd.f32 %v700, 1e-12
    %v702 = vrsqrt.pop %v701
    %v703 = vmul.f32 %v702, %v701
    %v704 = vmul.f32 %v703, %v702
    %v705 = vmul.f32 0.5, %v704
    %v706 = vsub.f32 1.5, %v705
    %v707 = vmul.f32 %v702, %v706
    %vm708 = vweird.f32 %v701
    %vm709 = vweird.f32 %v702
    %vm710 = vmor %vm708, %vm709
    %v711 = vsel %vm710, %v702, %v707
    %v712 = vmul.f32 %v695, %v711
    %v714 = vperm.slane %v689, 0
    %v716 = vmul.f32 %v712, %v714
    %v718 = vperm.slane %v690, 0
    %v720 = vadd.f32 %v716, %v718
    %v721 = vpack.c.bf16 %v720, %v720
    %v722 = vld [vmem:[%s18] sm:$0xf]
    %v723 = vld [vmem:[%s18 + $0x4] sm:$0xf]
    %v724 = vld [vmem:[%s18 + $0x8] sm:$0xf]
    %v725 = vld [vmem:[%s18 + $0xc] sm:$0xf]
    %v726 = vld [vmem:[%s19] sm:$0x1]
    %v728 = vperm.slane %v726, 0
    %v734 = vunpack.c.l.b16 %v722
    %v735 = vunpack.c.l.b16 %v723
    %v736 = vunpack.c.l.b16 %v724
    %v737 = vunpack.c.l.b16 %v725
    %v738 = vpack.c.b16 %v735, %v734
    %v739 = vpack.c.b16 %v737, %v736
    %v743 = vsel %vm291, %v721, 0
    %745 = vmatpush.bf16.msra.mxu0 0
    %746 = vmatpush.bf16.msra.mxu0 0
    %747 = vmatpush.bf16.msra.mxu0 0
    %748 = vmatpush.bf16.msra.mxu0 0
    %749 = vmatpush.bf16.msra.mxu0 0
    %750 = vmatpush.bf16.msra.mxu0 0
    %751 = vmatpush.bf16.msra.mxu0 %v739
    %752 = vmatpush.bf16.msra.mxu0 %v738
    %753 = vmatmul.bf16.gmra.mxu0 %v743
    %v754 = vpop.f32.mrf.mxu0
    %v755 = vadd.f32 %v728, %v754
    %v756 = vpop.f32.mrf.mxu0
    %757 = vdwg.mxu0
    %vm758 = vcmask 1041408
    %v759 = vsel %vm758, %v755, 0.0
    %760 = vst [vmem:[#allocation25] sm:$0xff] %v759
    // Predicated region
    $region138: #{tpu_custom_call.1} parent=1 // pred_check
      _
    $region139: #{tpu_custom_call.1} parent=1 // pred_check_branch
      %762 = sbr.rel (0) target = $region141
    $region140: #{tpu_custom_call.1} parent=1 // pred_region
      %764 = vsyncadd [#allocation4], 0
      %s766 = sshll.u32 [#allocation25], 4
      %s767 = int_to_ptr.vmem [resolvable:$true] %s766
      %s768 = sshll.u32 %s20, 4
      %s769 = int_to_ptr.hbm [resolvable:$true] %s768
      %771 = dma.vmem_to_hbm [thread:$0]  %s767, 128, %s769, [#allocation4]
    $region141: #{tpu_custom_call.1} parent=1 // pred_fallthru
      _
    // Predicated region
    $region142: #{tpu_custom_call.1} parent=1 // pred_check
      _
    $region143: #{tpu_custom_call.1} parent=1 // pred_check_branch
      %773 = sbr.rel (0) target = $region145
    $region144: #{tpu_custom_call.1} parent=1 // pred_region
      %775 = dma.done [#allocation4], 128
    $region145: #{tpu_custom_call.1} parent=1 // pred_fallthru
      _
    %776 = vsyncpa [#allocation3], 1
    %777 = vsyncpa [#allocation6], 1
    %778 = vsyncpa [#allocation9], 1
    %779 = vsyncpa [#allocation12], 1
    %780 = vsyncpa [#allocation15], 1
    %781 = vsyncpa [#allocation18], 1
    %782 = vsyncpa [#allocation21], 1
    %783 = vsyncpa [#allocation24], 1
    %784 = vsyncpa [#allocation4], 1

</llo_original>
